<compile_context>
chip_gen: v7x
topology: tpu7x:2x2x1
jax: 0.10.0
libtpu: 0.0.40
codegen_flags: <defaults>
</compile_context>

<pallas_src>
import math

import jax
import jax.numpy as jnp
from jax.experimental import pallas as pl
from jax.experimental.pallas import tpu as pltpu


def _round_up(x, m):
    return (x + m - 1) // m * m


def _vmem_capacity_bytes():
    """Physical VMEM of the local TPU generation (fallback = 64 MiB, the smallest: v7x)."""
    try:
        cap = getattr(pltpu.get_tpu_info(), "vmem_capacity_bytes", None)
        if cap:
            return int(cap)
    except Exception:
        pass
    return 64 * 2 ** 20


# ---------------------------------------------------------------------------
# Pallas kernel: conv-as-matmul on pre-sampled weights + bias add
#   patch_ref : [m_tile, K]       bf16   (im2col rows of this tile)
#   w_ref     : [K, Cout_p]       bf16   (per-sample reparameterized weight, precomputed)
#   b_ref     : [1, Cout_p]       f32    (per-sample reparameterized bias, precomputed)
#   out_ref   : [m_tile, Cout_p]  f32 or bf16
# ---------------------------------------------------------------------------
def _svi_conv2d_kernel(patch_ref, w_ref, b_ref, out_ref):
    acc = jnp.dot(patch_ref[...], w_ref[...],
                  preferred_element_type=jnp.float32)            # [m_tile, Cout_p] f32
    out_ref[...] = (acc + b_ref[...]).astype(out_ref.dtype)      # bias broadcast over rows


# ---------------------------------------------------------------------------
# Glue: channel-last im2col (torch .unfold semantics), built directly in bf16
# ---------------------------------------------------------------------------
def _im2col_channels_last(x, kh, kw, sh, sw, pad, dtype):
    """x: [E, S, C, H, W] -> patches [S, M=E*oH*oW, K=kh*kw*C] in `dtype` (K order kh,kw,C)."""
    # Transpose + cast the *input* (kh*kw times smaller than the patches tensor), then
    # build the patches tensor directly in the [S, M, K] layout/dtype the kernel consumes:
    # the big tensor never takes an f32 or transpose round trip through HBM.
    xt = jnp.transpose(x, (1, 0, 3, 4, 2)).astype(dtype)         # [S, E, H, W, C]
    if pad > 0:
        xt = jnp.pad(xt, ((0, 0), (0, 0), (pad, pad), (pad, pad), (0, 0)))
    S, E, Hp, Wp, C = xt.shape
    oH = (Hp - kh) // sh + 1
    oW = (Wp - kw) // sw + 1
    cols = []
    for i in range(kh):
        for j in range(kw):
            cols.append(xt[:, :, i:i + (oH - 1) * sh + 1:sh,
                               j:j + (oW - 1) * sw + 1:sw, :])
    p = jnp.stack(cols, axis=4)                                  # [S, E, oH, oW, kh*kw, C]
    return p.reshape(S, E * oH * oW, kh * kw * C), oH, oW


def svi_conv2d_forward(x, weight_mus, weight_rhos, bias_mus, bias_rhos,
                       weight_eps, bias_eps, *, stride=(1, 1), padding=0,
                       m_tile=None, matmul_dtype=jnp.bfloat16,
                       out_store_dtype=None, channels_last_output=False):
    """
    Forward of SVIConv2D (non-pretraining path, reparameterization trick).

    x          : [E, S, Cin, H, W]  float32
    weight_mus : [Cout, Cin, kH, kW]      weight_rhos: same shape
    bias_mus   : [Cout]                   bias_rhos  : [Cout]
    weight_eps : [S, Cout, Cin, kH, kW]   bias_eps   : [S, Cout]
    returns    : [E, S, Cout, oH, oW] f32 (torch layout), or
                 [E, S, oH, oW, Cout] f32 if channels_last_output=True.

    Precision note: matmul operands are rounded to `matmul_dtype` (bf16 by default) with
    f32 accumulation — same trade-off as v2, flagged for users expecting torch-f32 conv.
    `out_store_dtype=bf16` additionally rounds the stored result (halves output HBM
    traffic, useful when Cout << 128); the returned array is always f32.
    """
    E, S, Cin, H, W = x.shape
    Cout, _, kH, kW = weight_mus.shape
    sh, sw = stride

    patches_2d, oH, oW = _im2col_channels_last(x, kH, kW, sh, sw, padding, matmul_dtype)
    M = E * oH * oW
    K = Cin * kH * kW

    cout_p = _round_up(Cout, 128)                      # lane-dense output / MXU N dimension
    in_itemsize = jnp.dtype(matmul_dtype).itemsize
    store_dtype = jnp.dtype(out_store_dtype) if out_store_dtype is not None else jnp.dtype(jnp.float32)
    out_itemsize = store_dtype.itemsize
    align = 16 if in_itemsize < 4 else 8               # bf16-safe sublane multiple
    lane_k = _round_up(K, 128)                         # lanes a patches row occupies in VMEM

    # --- per-sample reparameterized parameters, hoisted out of the kernel ---------------
    # (numerically identical to the fused version: the kernel cast w to matmul_dtype right
    #  before the dot; doing it here removes the per-M-tile FMA and 2/3 of the weight HBM
    #  stream, and shrinks the resident weight VMEM block to one bf16 buffer.)
    w_sigma = jax.nn.softplus(weight_rhos)             # stable log(1 + exp(rho))
    b_sigma = jax.nn.softplus(bias_rhos)
    w_sampled = weight_mus[None] + w_sigma[None] * weight_eps       # [S, Cout, Cin, kH, kW]
    # K ordered (kH, kW, Cin) to match the channels-last patches; Cout zero-padded to 128.
    w_sampled = jnp.transpose(w_sampled, (0, 3, 4, 2, 1)).reshape(S, K, Cout)
    w_sampled = jnp.pad(w_sampled, ((0, 0), (0, 0), (0, cout_p - Cout))).astype(matmul_dtype)
    b_sampled = bias_mus[None] + b_sigma[None] * bias_eps            # [S, Cout] f32
    b_sampled = jnp.pad(b_sampled.reshape(S, 1, Cout),
                        ((0, 0), (0, 0), (0, cout_p - Cout)))

    # --- generation-aware VMEM budgeting (counts weight/bias residency before sizing
    #     the M tile; safe on v7x's 64 MiB as well as v5e/v6e's 128 MiB) -----------------
    phys = _vmem_capacity_bytes()
    kernel_budget = int(phys * 0.6)                                  # ~38 MiB v7x / ~77 MiB v5e,v6e
    w_res = 2 * _round_up(K, align) * cout_p * in_itemsize           # dbl-buffered weight block
    b_res = 2 * 8 * cout_p * 4                                       # dbl-buffered bias block
    stream_budget = max(kernel_budget - w_res - b_res, 2 * 2 ** 20)
    bytes_per_row = lane_k * in_itemsize + cout_p * out_itemsize     # patches row + output row
    if m_tile is None:
        fit = max(align, (stream_budget // (2 * bytes_per_row)) // align * align)
        m_tile = min(_round_up(M, align), 4096, fit)
    m_tile = max(align, _round_up(m_tile, align))
    M_pad = _round_up(M, m_tile)
    grid_m = M_pad // m_tile
    if M_pad != M:
        patches_2d = jnp.pad(patches_2d, ((0, 0), (0, M_pad - M), (0, 0)))

    est = (2 * m_tile * lane_k * in_itemsize           # double-buffered patches tile
           + 2 * m_tile * cout_p * out_itemsize        # double-buffered output tile
           + w_res + b_res)                            # resident weight + bias blocks
    vmem_limit = int(min(max(est + est // 2, 16 * 2 ** 20), int(phys * 0.85)))

    out = pl.pallas_call(
        _svi_conv2d_kernel,
        out_shape=jax.ShapeDtypeStruct((S, M_pad, cout_p), store_dtype),
        grid_spec=pltpu.PrefetchScalarGridSpec(
            num_scalar_prefetch=0,
            # S leading: the sampled weight/bias blocks are re-fetched only when the
            # sample index changes (once per grid_m steps) and stay resident across all
            # M tiles of a sample.  Both axes are independent -> fully "parallel".
            grid=(S, grid_m),
            in_specs=[
                pl.BlockSpec((None, m_tile, K), lambda j, i: (j, i, 0)),      # patches[j], tile i
                pl.BlockSpec((None, K, cout_p), lambda j, i: (j, 0, 0)),      # sampled weight[j]
                pl.BlockSpec((None, 1, cout_p), lambda j, i: (j, 0, 0)),      # sampled bias[j]
            ],
            out_specs=pl.BlockSpec((None, m_tile, cout_p), lambda j, i: (j, i, 0)),
        ),
        compiler_params=pltpu.CompilerParams(
            dimension_semantics=("parallel", "parallel"),
            vmem_limit_bytes=vmem_limit),
    )(patches_2d, w_sampled, b_sampled)

    # NOTE: padded M rows of the raw [S, M_pad, cout_p] buffer hold the bias value
    # (zero patches @ w + b), not zeros; they are sliced off here.
    out = out[:, :M, :Cout].astype(jnp.float32).reshape(S, E, oH, oW, Cout)
    if channels_last_output:
        # Leading-axes-only swap: avoids the full minor-dim layout transpose below.
        return jnp.transpose(out, (1, 0, 2, 3, 4))                 # [E, S, oH, oW, Cout]
    return jnp.transpose(out, (1, 0, 4, 2, 3))                     # [E, S, Cout, oH, oW]


# ---------------------------------------------------------------------------
# Pure-JAX reference (mirrors torch forward) for verification
# ---------------------------------------------------------------------------
def svi_conv2d_reference(x, weight_mus, weight_rhos, bias_mus, bias_rhos,
                         weight_eps, bias_eps, *, stride=(1, 1), padding=0,
                         matmul_dtype=jnp.float32):
    Cout, Cin, kH, kW = weight_mus.shape
    sh, sw = stride
    w_sigma = jax.nn.softplus(weight_rhos)
    b_sigma = jax.nn.softplus(bias_rhos)
    weight = weight_mus[None] + w_sigma[None] * weight_eps        # [S, Cout, Cin, kH, kW]
    bias = bias_mus[None] + b_sigma[None] * bias_eps              # [S, Cout]
    xp = x
    if padding > 0:
        xp = jnp.pad(xp, ((0, 0), (0, 0), (0, 0), (padding, padding), (padding, padding)))
    E, S, _, Hp, Wp = xp.shape
    oH = (Hp - kH) // sh + 1
    oW = (Wp - kW) // sw + 1
    cols = []
    for i in range(kH):
        for j in range(kW):
            cols.append(xp[:, :, :, i:i + (oH - 1) * sh + 1:sh,
                                   j:j + (oW - 1) * sw + 1:sw])
    patches = jnp.stack(cols, axis=-1).reshape(E, S, Cin, oH, oW, kH, kW)
    out = jnp.einsum('ijklmno,jpkno->ijplm',
                     patches.astype(matmul_dtype), weight.astype(matmul_dtype),
                     preferred_element_type=jnp.float32)
    return out + bias[None, :, :, None, None]


if __name__ == "__main__":
    # Small shapes consistent with the module's forward:
    #   x : [examples=2, samples=3, in_channels=4, H=8, W=8]
    E, S, Cin, H, W = 2, 3, 4, 8, 8
    Cout, kH, kW = 8, 3, 3
    stride, padding = (1, 1), 1
    initial_rho = -4.0

    key = jax.random.PRNGKey(0)
    k_x, k_wr, k_wm, k_br, k_bm, k_we, k_be = jax.random.split(key, 7)

    x = jax.random.normal(k_x, (E, S, Cin, H, W), dtype=jnp.float32)

    # Deterministic parameter init mimicking reset_parameters():
    weight_rhos = initial_rho + 0.5 * jax.random.normal(k_wr, (Cout, Cin, kH, kW), dtype=jnp.float32)
    fan_in = Cin * kH * kW
    gain = math.sqrt(2.0 / (1.0 + 1.92))                      # kaiming_uniform with a=sqrt(1.92)
    w_bound = gain * math.sqrt(3.0 / fan_in)
    weight_mus = jax.random.uniform(k_wm, (Cout, Cin, kH, kW), dtype=jnp.float32,
                                    minval=-w_bound, maxval=w_bound)
    bias_rhos = initial_rho + 0.5 * jax.random.normal(k_br, (Cout,), dtype=jnp.float32)
    b_bound = 1.0 / math.sqrt(fan_in)
    bias_mus = jax.random.uniform(k_bm, (Cout,), dtype=jnp.float32,
                                  minval=-b_bound, maxval=b_bound)

    # Variational noise (one draw per sample).
    # TODO(synk): the radial-BNN "radial" noise distribution lives in an external
    # utils.distributions module not provided here; standard Gaussian noise is used instead.
    weight_eps = jax.random.normal(k_we, (S, Cout, Cin, kH, kW), dtype=jnp.float32)
    bias_eps = jax.random.normal(k_be, (S, Cout), dtype=jnp.float32)

    # Default auto-tiled call (single M tile at these tiny shapes), f32 output store.
    out = svi_conv2d_forward(x, weight_mus, weight_rhos, bias_mus, bias_rhos,
                             weight_eps, bias_eps, stride=stride, padding=padding)
    out = jax.block_until_ready(out)

    # Forced multi-tile call (exercises the M-tiling grid axis: 128 rows -> 2 tiles of 64).
    out_tiled = svi_conv2d_forward(x, weight_mus, weight_rhos, bias_mus, bias_rhos,
                                   weight_eps, bias_eps, stride=stride, padding=padding,
                                   m_tile=64)
    out_tiled = jax.block_until_ready(out_tiled)

    # bf16 output-store variant (halves the lane-padded output HBM stream for small Cout).
    out_b16 = svi_conv2d_forward(x, weight_mus, weight_rhos, bias_mus, bias_rhos,
                                 weight_eps, bias_eps, stride=stride, padding=padding,
                                 out_store_dtype=jnp.bfloat16)
    out_b16 = jax.block_until_ready(out_b16)

    # Channels-last output variant (skips the minor-dim layout transpose).
    out_cl = svi_conv2d_forward(x, weight_mus, weight_rhos, bias_mus, bias_rhos,
                                weight_eps, bias_eps, stride=stride, padding=padding,
                                channels_last_output=True)
    out_cl = jax.block_until_ready(out_cl)

    # Precision-matched reference (bf16 matmul operands, f32 accumulation) and f32 reference.
    ref_bf16 = svi_conv2d_reference(x, weight_mus, weight_rhos, bias_mus, bias_rhos,
                                    weight_eps, bias_eps, stride=stride, padding=padding,
                                    matmul_dtype=jnp.bfloat16)
    ref_f32 = svi_conv2d_reference(x, weight_mus, weight_rhos, bias_mus, bias_rhos,
                                   weight_eps, bias_eps, stride=stride, padding=padding,
                                   matmul_dtype=jnp.float32)
    ref_bf16 = jax.block_until_ready(ref_bf16)
    ref_f32 = jax.block_until_ready(ref_f32)

    assert out.shape == (E, S, Cout, H, W), out.shape
    assert out_tiled.shape == (E, S, Cout, H, W), out_tiled.shape
    assert out_cl.shape == (E, S, H, W, Cout), out_cl.shape
    assert jnp.allclose(out, ref_bf16, atol=1e-3, rtol=1e-3), \
        float(jnp.max(jnp.abs(out - ref_bf16)))
    assert jnp.allclose(out_tiled, ref_bf16, atol=1e-3, rtol=1e-3), \
        float(jnp.max(jnp.abs(out_tiled - ref_bf16)))
    assert jnp.allclose(out_b16, ref_bf16, atol=2e-2, rtol=2e-2), \
        float(jnp.max(jnp.abs(out_b16 - ref_bf16)))
    assert jnp.allclose(jnp.transpose(out_cl, (0, 1, 4, 2, 3)), out, atol=0.0, rtol=0.0)
    assert jnp.allclose(out, ref_f32, atol=1e-1, rtol=1e-1), \
        float(jnp.max(jnp.abs(out - ref_f32)))
    print("KERNEL_OK")
</pallas_src>

<mosaic_0001>
module attributes {stable_mosaic.version = 11 : i64} {
  func.func @_svi_conv2d_kernel(%arg0: i32, %arg1: i32, %arg2: memref<1x128x36xbf16, #tpu.memory_space<vmem>>, %arg3: memref<1x36x128xbf16, #tpu.memory_space<vmem>>, %arg4: memref<1x1x128xf32, #tpu.memory_space<vmem>>, %arg5: memref<1x128x128xf32, #tpu.memory_space<vmem>>) attributes {dimension_semantics = [#tpu.dimension_semantics<parallel>, #tpu.dimension_semantics<parallel>], iteration_bounds = array<i64: 3, 1>, scalar_prefetch = 0 : i64, scratch_operands = 0 : i64, tpu.core_type = #tpu.core_type<tc>, window_params = [{transform_indices = @transform_0, window_bounds = array<i64: 1, 128, 36>}, {transform_indices = @transform_1, window_bounds = array<i64: 1, 36, 128>}, {transform_indices = @transform_2, window_bounds = array<i64: 1, 1, 128>}, {transform_indices = @transform_3, window_bounds = array<i64: 1, 128, 128>}]} {
    %c0 = arith.constant 0 : index
    %c0_0 = arith.constant 0 : index
    %c0_1 = arith.constant 0 : index
    %0 = vector.load %arg2[%c0, %c0_0, %c0_1] : memref<1x128x36xbf16, #tpu.memory_space<vmem>>, vector<1x128x36xbf16>
    %1 = vector.shape_cast %0 : vector<1x128x36xbf16> to vector<128x36xbf16>
    %c0_2 = arith.constant 0 : index
    %c0_3 = arith.constant 0 : index
    %c0_4 = arith.constant 0 : index
    %2 = vector.load %arg3[%c0_2, %c0_3, %c0_4] : memref<1x36x128xbf16, #tpu.memory_space<vmem>>, vector<1x36x128xbf16>
    %3 = vector.shape_cast %2 : vector<1x36x128xbf16> to vector<36x128xbf16>
    %cst = arith.constant dense<0.000000e+00> : vector<128x128xf32>
    %4 = tpu.matmul %1, %3, %cst {dimension_numbers = #tpu.dot_dimension_numbers<[1], [0], [0], [1], [0, 0, 1, 1], [], []>} : vector<128x36xbf16>, vector<36x128xbf16>, vector<128x128xf32> -> vector<128x128xf32>
    %c0_5 = arith.constant 0 : index
    %c0_6 = arith.constant 0 : index
    %c0_7 = arith.constant 0 : index
    %5 = vector.load %arg4[%c0_5, %c0_6, %c0_7] : memref<1x1x128xf32, #tpu.memory_space<vmem>>, vector<1x1x128xf32>
    %6 = vector.shape_cast %5 : vector<1x1x128xf32> to vector<1x128xf32>
    %7 = vector.broadcast %6 : vector<1x128xf32> to vector<128x128xf32>
    %8 = arith.addf %4, %7 : vector<128x128xf32>
    %c0_8 = arith.constant 0 : index
    %c0_9 = arith.constant 0 : index
    %c0_10 = arith.constant 0 : index
    %9 = vector.load %arg5[%c0_8, %c0_9, %c0_10] : memref<1x128x128xf32, #tpu.memory_space<vmem>>, vector<1x128x128xf32>
    %10 = vector.shape_cast %9 : vector<1x128x128xf32> to vector<128x128xf32>
    %11 = vector.shape_cast %8 : vector<128x128xf32> to vector<1x128x128xf32>
    tpu.vector_store %arg5[%c0_8, %c0_9, %c0_10], %11 {strides = array<i32>} : memref<1x128x128xf32, #tpu.memory_space<vmem>>, vector<1x128x128xf32>,
    return
  }
  func.func @transform_0(%arg0: i32, %arg1: i32) -> (i32, i32, i32) {
    %c0_i32 = arith.constant 0 : i32
    %c0_i32_0 = arith.constant 0 : i32
    return %arg0, %arg1, %c0_i32 : i32, i32, i32
  }
  func.func @transform_1(%arg0: i32, %arg1: i32) -> (i32, i32, i32) {
    %c0_i32 = arith.constant 0 : i32
    %c0_i32_0 = arith.constant 0 : i32
    %c0_i32_1 = arith.constant 0 : i32
    return %arg0, %c0_i32, %c0_i32_0 : i32, i32, i32
  }
  func.func @transform_2(%arg0: i32, %arg1: i32) -> (i32, i32, i32) {
    %c0_i32 = arith.constant 0 : i32
    %c0_i32_0 = arith.constant 0 : i32
    %c0_i32_1 = arith.constant 0 : i32
    return %arg0, %c0_i32, %c0_i32_0 : i32, i32, i32
  }
  func.func @transform_3(%arg0: i32, %arg1: i32) -> (i32, i32, i32) {
    %c0_i32 = arith.constant 0 : i32
    %c0_i32_0 = arith.constant 0 : i32
    return %arg0, %arg1, %c0_i32 : i32, i32, i32
  }
}

</mosaic_0001>

<llo_original>
// kernel: tpu_custom_call.1
$region0: #{tpu_custom_call.1}
  #allocation0 [shape = 'u32[]', space=smem, size = 0x4, offset = 0x4, fixed_abs, tag = 'smem constant byte address 0x4 - core index']
  #allocation1 [shape = 'u32[144,128]{1,0:T(1,128)}', space=vmem, size = 0x12000, scoped, tag = 'internal scratch']
  %s0 = inlined_call_operand.vmem [shape: bf16[3,128,36], index: 0, kind: input, shape index: {}]
  %s1 = inlined_call_operand.vmem [shape: bf16[3,36,128], index: 1, kind: input, shape index: {}]
  %s2 = inlined_call_operand.vmem [shape: f32[3,1,128], index: 2, kind: input, shape index: {}]
  %s3 = inlined_call_operand.hbm [shape: f32[3,128,128], index: 3, kind: output, shape index: {}]
  %s4 = sld [smem:[#allocation0]]
  $region45: #{tpu_custom_call.1} parent=0
    _
  %s6 = ssub.s32 1, %s4
  %s7 = scalar_select 0, %s6, %s4
  $region1: #{tpu_custom_call.1} parent=0
    #allocation2 [shape = 'u8[131072]{0}', space=vmem, size = 0x20000, scoped, tag = 'output window, operand 0']
    #allocation3 [shape = 's32[2]{0}', space=sflag, size = 0x8, scoped, tag = 'scoped memory for tpu_custom_call.1']
    %8 = vsyncpa [#allocation3], 0
    %s9 = scalar_lea.sflag [#allocation3], 1
    %10 = vsyncpa %s9, 0
    loop: start=0, step=1, limit=5
    $region2: #{tpu_custom_call.1} parent=1 // loop_pre_header
      _
    $region3: #{tpu_custom_call.1} parent=1 // loop_header
      %s12 = sphi 0, %s16
      %p13 = scmp.ge.s32.totalorder %s12, 5
      %s19 = sphi 0, %s31
      %s20 = sphi 0, %s27
      %s21 = sphi 0, %s19
      %s22 = sphi 0, %s20
      %s23 = sphi 0, %s21
      %s24 = sphi 0, %s22
      %s36 = sphi 0, %s38
      %s39 = sphi 0, %s36
      %s40 = sphi 0, %s39
      %s56 = sphi 0, %s40
      %s62 = sphi 0, %s64
      %s65 = sphi 0, %s62
      %s66 = sphi 0, %s65
      %s82 = sphi 0, %s66
      %s88 = sphi 0, %s90
      %s91 = sphi 0, %s88
      %s92 = sphi 0, %s91
      %s108 = sphi 0, %s92
      %s116 = sphi 0, %s118
      %s119 = sphi 0, %s116
      %s120 = sphi 0, %s119
      %s136 = sphi 0, %s120
    $region4: #{tpu_custom_call.1} parent=1 // loop_header_branch
      %15 = sbr.rel (%p13) target = $region8
    $region5: #{tpu_custom_call.1} parent=1 // loop_body
      %s17 = ssub.s32 %s12, 1
      %s18 = ssub.s32 %s12, 2
      %s25 = sadd.s32 1, %s20
      %p26 = scmp.ge.s32.totalorder %s25, 1
      %s27 = scalar_select %p26, 0, %s25
      %s28 = sadd.s32 1, %s19
      %s29 = scalar_select %p26, %s28, %s19
      %p30 = scmp.ge.s32.totalorder %s29, 3
      %s31 = scalar_select %p30, 0, %s29
      %s32 = ssub.s32 %s19, %s31
      %s33 = ssub.s32 %s20, %s27
      %s34 = sor.u32 %s32, %s33
      %p35 = scmp.eq.s32.totalorder %s34, 0
      %s37 = sadd.s32 %s36, 1
      %s38 = scalar_select %p35, %s36, %s37
      %p41 = pneg %p35
      %p42 = scmp.eq.s32.totalorder %s12, 2
      %p43 = por %p41, %p42
      %p44 = scmp.ne.s32.totalorder %s36, %s39
      %p45 = scmp.eq.s32.totalorder %s12, 0
      %p46 = por %p44, %p45
      %p47 = scmp.ne.s32.totalorder %s36, %s39
      %p48 = scmp.eq.s32.totalorder %s17, 2
      %p49 = por %p47, %p48
      %p50 = scmp.ne.s32.totalorder %s39, %s40
      %p51 = scmp.eq.s32.totalorder %s17, 0
      %p52 = por %p50, %p51
      %p53 = scmp.ne.s32.totalorder %s39, %s40
      %p54 = scmp.eq.s32.totalorder %s18, 2
      %p55 = por %p53, %p54
      %p57 = scmp.ne.s32.totalorder %s40, %s56
      %p58 = scmp.eq.s32.totalorder %s18, 0
      %p59 = por %p57, %p58
      %s60 = ssub.s32 %s19, %s31
      %p61 = scmp.eq.s32.totalorder %s60, 0
      %s63 = sadd.s32 %s62, 1
      %s64 = scalar_select %p61, %s62, %s63
      %p67 = pneg %p61
      %p68 = scmp.eq.s32.totalorder %s12, 2
      %p69 = por %p67, %p68
      %p70 = scmp.ne.s32.totalorder %s62, %s65
      %p71 = scmp.eq.s32.totalorder %s12, 0
      %p72 = por %p70, %p71
      %p73 = scmp.ne.s32.totalorder %s62, %s65
      %p74 = scmp.eq.s32.totalorder %s17, 2
      %p75 = por %p73, %p74
      %p76 = scmp.ne.s32.totalorder %s65, %s66
      %p77 = scmp.eq.s32.totalorder %s17, 0
      %p78 = por %p76, %p77
      %p79 = scmp.ne.s32.totalorder %s65, %s66
      %p80 = scmp.eq.s32.totalorder %s18, 2
      %p81 = por %p79, %p80
      %p83 = scmp.ne.s32.totalorder %s66, %s82
      %p84 = scmp.eq.s32.totalorder %s18, 0
      %p85 = por %p83, %p84
      %s86 = ssub.s32 %s19, %s31
      %p87 = scmp.eq.s32.totalorder %s86, 0
      %s89 = sadd.s32 %s88, 1
      %s90 = scalar_select %p87, %s88, %s89
      %p93 = pneg %p87
      %p94 = scmp.eq.s32.totalorder %s12, 2
      %p95 = por %p93, %p94
      %p96 = scmp.ne.s32.totalorder %s88, %s91
      %p97 = scmp.eq.s32.totalorder %s12, 0
      %p98 = por %p96, %p97
      %p99 = scmp.ne.s32.totalorder %s88, %s91
      %p100 = scmp.eq.s32.totalorder %s17, 2
      %p101 = por %p99, %p100
      %p102 = scmp.ne.s32.totalorder %s91, %s92
      %p103 = scmp.eq.s32.totalorder %s17, 0
      %p104 = por %p102, %p103
      %p105 = scmp.ne.s32.totalorder %s91, %s92
      %p106 = scmp.eq.s32.totalorder %s18, 2
      %p107 = por %p105, %p106
      %p109 = scmp.ne.s32.totalorder %s92, %s108
      %p110 = scmp.eq.s32.totalorder %s18, 0
      %p111 = por %p109, %p110
      %s112 = ssub.s32 %s19, %s31
      %s113 = ssub.s32 %s20, %s27
      %s114 = sor.u32 %s112, %s113
      %p115 = scmp.eq.s32.totalorder %s114, 0
      %s117 = sadd.s32 %s116, 1
      %s118 = scalar_select %p115, %s116, %s117
      %p121 = pneg %p115
      %p122 = scmp.eq.s32.totalorder %s12, 2
      %p123 = por %p121, %p122
      %p124 = scmp.ne.s32.totalorder %s116, %s119
      %p125 = scmp.eq.s32.totalorder %s12, 0
      %p126 = por %p124, %p125
      %p127 = scmp.ne.s32.totalorder %s116, %s119
      %p128 = scmp.eq.s32.totalorder %s17, 2
      %p129 = por %p127, %p128
      %p130 = scmp.ne.s32.totalorder %s119, %s120
      %p131 = scmp.eq.s32.totalorder %s17, 0
      %p132 = por %p130, %p131
      %p133 = scmp.ne.s32.totalorder %s119, %s120
      %p134 = scmp.eq.s32.totalorder %s18, 2
      %p135 = por %p133, %p134
      %p137 = scmp.ne.s32.totalorder %s120, %s136
      %p138 = scmp.eq.s32.totalorder %s18, 0
      %p139 = por %p137, %p138
      %p140 = scmp.le.s32.totalorder 1, %s12
      %p141 = scmp.lt.s32.totalorder %s12, 4
      %p142 = pnand %p140, %p141
      %p143 = pneg %p142
      // Predicated region
      $region9: #{tpu_custom_call.1} parent=5 // pred_check
        _
      $region10: #{tpu_custom_call.1} parent=5 // pred_check_branch
        %145 = sbr.rel (%p142) target = $region12
      $region11: #{tpu_custom_call.1} parent=5 // pred_region
        %s146 = ssub.s32 %s12, 1
      $region12: #{tpu_custom_call.1} parent=5 // pred_fallthru
        _
      %p147 = scmp.lt.s32.totalorder %s12, 3
      // Predicated region
      $region13: #{tpu_custom_call.1} parent=5 // pred_check
        %p148 = pneg %p147
      $region14: #{tpu_custom_call.1} parent=5 // pred_check_branch
        %150 = sbr.rel (%p148) target = $region16
      $region15: #{tpu_custom_call.1} parent=5 // pred_region
        // Predicated region
        $region17: #{tpu_custom_call.1} parent=15 // pred_check
          %p151 = pneg %p46
        $region18: #{tpu_custom_call.1} parent=15 // pred_check_branch
          %153 = sbr.rel (%p151) target = $region20
        $region19: #{tpu_custom_call.1} parent=15 // pred_region
          %s154 = smul.u32 16, %s20
          %p155 = scmp.lt.s32.totalorder %s19, 2
          %s156 = scalar_select %p155, %s19, 2
          %p157 = scmp.lt.s32.totalorder %s154, 15
          %s158 = scalar_select %p157, %s154, 15
          %s159 = smul.addr %s156, 16
          %s160 = sadd.s32 %s158, %s159
          %s161 = smul.addr %s160, 4
          %s162 = scalar_lea.vmem %s0, %s161
          %s163 = smul.u32 16, %s20
        $region20: #{tpu_custom_call.1} parent=15 // pred_fallthru
          _
        // Predicated region
        $region21: #{tpu_custom_call.1} parent=15 // pred_check
          %p164 = pneg %p72
        $region22: #{tpu_custom_call.1} parent=15 // pred_check_branch
          %166 = sbr.rel (%p164) target = $region24
        $region23: #{tpu_custom_call.1} parent=15 // pred_region
          %p167 = scmp.lt.s32.totalorder %s19, 2
          %s168 = scalar_select %p167, %s19, 2
          %s169 = smul.addr %s168, 5
          %s170 = smul.addr %s169, 4
          %s171 = scalar_lea.vmem %s1, %s170
        $region24: #{tpu_custom_call.1} parent=15 // pred_fallthru
          _
        // Predicated region
        $region25: #{tpu_custom_call.1} parent=15 // pred_check
          %p172 = pneg %p98
        $region26: #{tpu_custom_call.1} parent=15 // pred_check_branch
          %174 = sbr.rel (%p172) target = $region28
        $region27: #{tpu_custom_call.1} parent=15 // pred_region
          %p175 = scmp.lt.s32.totalorder %s19, 2
          %s176 = scalar_select %p175, %s19, 2
          %s177 = scalar_lea.vmem %s2, %s176
        $region28: #{tpu_custom_call.1} parent=15 // pred_fallthru
          _
      $region16: #{tpu_custom_call.1} parent=5 // pred_fallthru
        _
      %p178 = scmp.le.s32.totalorder 1, %s12
      %p179 = scmp.lt.s32.totalorder %s12, 4
      %p180 = pnand %p178, %p179
      %p181 = pneg %p180
      // Predicated region
      $region29: #{tpu_custom_call.1} parent=5 // pred_check
        _
      $region30: #{tpu_custom_call.1} parent=5 // pred_check_branch
        %183 = sbr.rel (%p180) target = $region32
      $region31: #{tpu_custom_call.1} parent=5 // pred_region
        %s184 = ssub.s32 %s12, 1
        %s185 = smul.u32 16, %s22
        %p186 = scmp.lt.s32.totalorder %s21, 2
        %s187 = scalar_select %p186, %s21, 2
        %p188 = scmp.lt.s32.totalorder %s185, 15
        %s189 = scalar_select %p188, %s185, 15
        %s190 = smul.addr %s187, 16
        %s191 = sadd.s32 %s189, %s190
        %s192 = smul.addr %s191, 4
        %s193 = scalar_lea.vmem %s0, %s192
        %p194 = pneg %p52
        %p195 = pneg %p49
        %p196 = scmp.lt.s32.totalorder %s21, 2
        %s197 = scalar_select %p196, %s21, 2
        %s198 = smul.addr %s197, 5
        %s199 = smul.addr %s198, 4
        %s200 = scalar_lea.vmem %s1, %s199
        %p201 = pneg %p78
        %p202 = pneg %p75
        %p203 = scmp.lt.s32.totalorder %s21, 2
        %s204 = scalar_select %p203, %s21, 2
        %s205 = scalar_lea.vmem %s2, %s204
        %p206 = pneg %p104
        %p207 = pneg %p101
        %p208 = pneg %p132
        %p209 = pneg %p129
        %s210 = sand.u32 %s119, 1
        %s211 = scalar_lea.sflag [#allocation3], %s210
        %s212 = sand.u32 %s119, 1
        %s213 = smul.addr %s212, 128
        %s214 = scalar_lea.vmem [#allocation2], %s213
        %s215 = smul.u32 16, %s22
        %p216 = scmp.lt.s32.totalorder %s21, 2
        %s217 = scalar_select %p216, %s21, 2
        %p218 = scmp.lt.s32.totalorder %s215, 15
        %s219 = scalar_select %p218, %s215, 15
        %s220 = smul.addr %s217, 16
        %s221 = sadd.s32 %s219, %s220
        %s222 = smul.addr %s221, 4
        %s223 = scalar_lea.vmem %s0, %s222
        %s224 = smul.u32 16, %s22
        %p225 = scmp.lt.s32.totalorder %s21, 2
        %s226 = scalar_select %p225, %s21, 2
        %s227 = smul.addr %s226, 5
        %s228 = smul.addr %s227, 4
        %s229 = scalar_lea.vmem %s1, %s228
        %p230 = scmp.lt.s32.totalorder %s21, 2
        %s231 = scalar_select %p230, %s21, 2
        %s232 = scalar_lea.vmem %s2, %s231
        %s233 = smul.u32 16, %s22
        %v235 = vld [vmem:[%s223] sm:$0xf]
        %v236 = vld [vmem:[%s223 + $0x4] sm:$0xf]
        %v237 = vld [vmem:[%s223 + $0x8] sm:$0xf]
        %v238 = vld [vmem:[%s223 + $0xc] sm:$0xf]
        %v239 = vld [vmem:[%s223 + $0x10] sm:$0xf]
        %v240 = vld [vmem:[%s223 + $0x14] sm:$0xf]
        %v241 = vld [vmem:[%s223 + $0x18] sm:$0xf]
        %v242 = vld [vmem:[%s223 + $0x1c] sm:$0xf]
        %v243 = vld [vmem:[%s223 + $0x20] sm:$0xf]
        %v244 = vld [vmem:[%s223 + $0x24] sm:$0xf]
        %v245 = vld [vmem:[%s223 + $0x28] sm:$0xf]
        %v246 = vld [vmem:[%s223 + $0x2c] sm:$0xf]
        %v247 = vld [vmem:[%s223 + $0x30] sm:$0xf]
        %v248 = vld [vmem:[%s223 + $0x34] sm:$0xf]
        %v249 = vld [vmem:[%s223 + $0x38] sm:$0xf]
        %v250 = vld [vmem:[%s223 + $0x3c] sm:$0xf]
        %v251 = vld [vmem:[%s229] sm:$0xf]
        %v252 = vld [vmem:[%s229 + $0x4] sm:$0xf]
        %v253 = vld [vmem:[%s229 + $0x8] sm:$0xf]
        %v254 = vld [vmem:[%s229 + $0xc] sm:$0xf]
        %v255 = vld [vmem:[%s229 + $0x10] sm:$0x3]
        %v256 = vld [vmem:[%s232] sm:$0x1]
        %v258 = vlaneseq
        %v259 = vshrl.u32 %v258, 7
        %v260 = vsub.s32 0, %v259
        %v261 = vrot.slane %v256, %v260
        %v279 = vunpack.c.l.b16 %v235
        %v280 = vunpack.c.l.b16 %v236
        %v281 = vunpack.c.l.b16 %v237
        %v282 = vunpack.c.l.b16 %v238
        %v283 = vunpack.c.l.b16 %v239
        %v284 = vunpack.c.l.b16 %v240
        %v285 = vunpack.c.l.b16 %v241
        %v286 = vunpack.c.l.b16 %v242
        %v287 = vunpack.c.l.b16 %v243
        %v288 = vunpack.c.l.b16 %v244
        %v289 = vunpack.c.l.b16 %v245
        %v290 = vunpack.c.l.b16 %v246
        %v291 = vunpack.c.l.b16 %v247
        %v292 = vunpack.c.l.b16 %v248
        %v293 = vunpack.c.l.b16 %v249
        %v294 = vunpack.c.l.b16 %v250
        %v295 = vpack.c.b16 %v280, %v279
        %v296 = vpack.c.b16 %v282, %v281
        %v297 = vpack.c.b16 %v284, %v283
        %v298 = vpack.c.b16 %v286, %v285
        %v299 = vpack.c.b16 %v288, %v287
        %v300 = vpack.c.b16 %v290, %v289
        %v301 = vpack.c.b16 %v292, %v291
        %v302 = vpack.c.b16 %v294, %v293
        %v308 = vunpack.c.l.b16 %v251
        %v309 = vunpack.c.l.b16 %v252
        %v310 = vunpack.c.l.b16 %v253
        %v311 = vunpack.c.l.b16 %v254
        %v312 = vunpack.c.l.b16 %v255
        %v313 = vpack.c.b16 %v309, %v308
        %v314 = vpack.c.b16 %v311, %v310
        %v315 = vpack.c.b16 %v312, %v312
        %vm318 = vcmask 293888
        %v320 = vsel %vm318, %v295, 0
        %v323 = vsel %vm318, %v296, 0
        %v326 = vsel %vm318, %v297, 0
        %v329 = vsel %vm318, %v298, 0
        %v332 = vsel %vm318, %v299, 0
        %v335 = vsel %vm318, %v300, 0
        %v338 = vsel %vm318, %v301, 0
        %v341 = vsel %vm318, %v302, 0
        %vm343 = vcmask 1041408
        %v345 = vsel %vm343, %v315, 0
        %347 = vmatprep.subr.bf16.mxu0 0
        %348 = vmatpush1.bf16.msra.mxu0 %v313
        %349 = vmatprep.subr.bf16.mxu0 0
        %350 = vmatpush1.bf16.msra.mxu0 %v314
        %351 = vmatprep.subr.bf16.mxu0 0
        %352 = vmatpush1.bf16.msra.mxu0 %v345
        %353 = vmatprep.subr.bf16.mxu0 0
        %354 = vmatpush1.bf16.msra.mxu0 0
        %355 = vmatprep.subr.bf16.mxu0 0
        %356 = vmatpush1.bf16.msra.mxu0 0
        %357 = vmatprep.subr.bf16.mxu0 0
        %358 = vmatpush1.bf16.msra.mxu0 0
        %359 = vmatprep.subr.bf16.mxu0 0
        %360 = vmatpush1.bf16.msra.mxu0 0
        %361 = vmatprep.subr.bf16.mxu0 0
        %362 = vmatpush1.bf16.msra.mxu0 0
        %363 = vmatprep.subr.bf16.mxu0 0
        %364 = vmatpush1.bf16.msra.mxu0 0
        %365 = vmatprep.subr.bf16.mxu0 0
        %366 = vmatpush1.bf16.msra.mxu0 0
        %367 = vmatprep.subr.bf16.mxu0 0
        %368 = vmatpush1.bf16.msra.mxu0 0
        %369 = vmatprep.subr.bf16.mxu0 0
        %370 = vmatpush1.bf16.msra.mxu0 0
        %371 = vmatprep.subr.bf16.mxu0 0
        %372 = vmatpush1.bf16.msra.mxu0 0
        %373 = vmatprep.subr.bf16.mxu0 0
        %374 = vmatpush1.bf16.msra.mxu0 0
        %375 = vmatprep.subr.bf16.mxu0 0
        %376 = vmatpush1.bf16.msra.mxu0 0
        %377 = vmatprep.subr.bf16.mxu0 0
        %378 = vmatpush1.bf16.msra.mxu0 0
        %379 = vmatprep.mubr.bf16.mxu0 0
        %380 = vmatmul.mubr.bf16.gmra.mrb[0].mxu0 %v320
        %v381 = vpop.f32.mrb[0].mxu0
        %v382 = vadd.f32 %v261, %v381
        %v383 = vpop.f32.mrb[0].mxu0
        %v384 = vpop.f32.mrb[0].mxu0
        %v385 = vadd.f32 %v261, %v384
        %v386 = vpop.f32.mrb[0].mxu0
        %387 = vmatprep.mubr.bf16.mxu0 0
        %388 = vmatmul.mubr.bf16.gmra.mrb[0].mxu0 %v323
        %v389 = vpop.f32.mrb[0].mxu0
        %v390 = vadd.f32 %v261, %v389
        %v391 = vpop.f32.mrb[0].mxu0
        %v392 = vpop.f32.mrb[0].mxu0
        %v393 = vadd.f32 %v261, %v392
        %v394 = vpop.f32.mrb[0].mxu0
        %395 = vmatprep.mubr.bf16.mxu0 0
        %396 = vmatmul.mubr.bf16.gmra.mrb[0].mxu0 %v326
        %v397 = vpop.f32.mrb[0].mxu0
        %v398 = vadd.f32 %v261, %v397
        %v399 = vpop.f32.mrb[0].mxu0
        %v400 = vpop.f32.mrb[0].mxu0
        %v401 = vadd.f32 %v261, %v400
        %v402 = vpop.f32.mrb[0].mxu0
        %403 = vmatprep.mubr.bf16.mxu0 0
        %404 = vmatmul.mubr.bf16.gmra.mrb[0].mxu0 %v329
        %v405 = vpop.f32.mrb[0].mxu0
        %v406 = vadd.f32 %v261, %v405
        %v407 = vpop.f32.mrb[0].mxu0
        %v408 = vpop.f32.mrb[0].mxu0
        %v409 = vadd.f32 %v261, %v408
        %v410 = vpop.f32.mrb[0].mxu0
        %411 = vmatprep.mubr.bf16.mxu0 0
        %412 = vmatmul.mubr.bf16.gmra.mrb[0].mxu0 %v332
        %v413 = vpop.f32.mrb[0].mxu0
        %v414 = vadd.f32 %v261, %v413
        %v415 = vpop.f32.mrb[0].mxu0
        %v416 = vpop.f32.mrb[0].mxu0
        %v417 = vadd.f32 %v261, %v416
        %v418 = vpop.f32.mrb[0].mxu0
        %419 = vmatprep.mubr.bf16.mxu0 0
        %420 = vmatmul.mubr.bf16.gmra.mrb[0].mxu0 %v335
        %v421 = vpop.f32.mrb[0].mxu0
        %v422 = vadd.f32 %v261, %v421
        %v423 = vpop.f32.mrb[0].mxu0
        %v424 = vpop.f32.mrb[0].mxu0
        %v425 = vadd.f32 %v261, %v424
        %v426 = vpop.f32.mrb[0].mxu0
        %427 = vmatprep.mubr.bf16.mxu0 0
        %428 = vmatmul.mubr.bf16.gmra.mrb[0].mxu0 %v338
        %v429 = vpop.f32.mrb[0].mxu0
        %v430 = vadd.f32 %v261, %v429
        %v431 = vpop.f32.mrb[0].mxu0
        %v432 = vpop.f32.mrb[0].mxu0
        %v433 = vadd.f32 %v261, %v432
        %v434 = vpop.f32.mrb[0].mxu0
        %435 = vmatprep.mubr.bf16.mxu0 0
        %436 = vmatmul.mubr.bf16.gmra.mrb[0].mxu0 %v341
        %v437 = vpop.f32.mrb[0].mxu0
        %v438 = vadd.f32 %v261, %v437
        %v439 = vpop.f32.mrb[0].mxu0
        %v440 = vpop.f32.mrb[0].mxu0
        %v441 = vadd.f32 %v261, %v440
        %v442 = vpop.f32.mrb[0].mxu0
        %443 = vdwg.mxu0
        %444 = vst [vmem:[%s214] sm:$0xff] %v382
        %445 = vst [vmem:[%s214 + $0x8] sm:$0xff] %v385
        %446 = vst [vmem:[%s214 + $0x10] sm:$0xff] %v390
        %447 = vst [vmem:[%s214 + $0x18] sm:$0xff] %v393
        %448 = vst [vmem:[%s214 + $0x20] sm:$0xff] %v398
        %449 = vst [vmem:[%s214 + $0x28] sm:$0xff] %v401
        %450 = vst [vmem:[%s214 + $0x30] sm:$0xff] %v406
        %451 = vst [vmem:[%s214 + $0x38] sm:$0xff] %v409
        %452 = vst [vmem:[%s214 + $0x40] sm:$0xff] %v414
        %453 = vst [vmem:[%s214 + $0x48] sm:$0xff] %v417
        %454 = vst [vmem:[%s214 + $0x50] sm:$0xff] %v422
        %455 = vst [vmem:[%s214 + $0x58] sm:$0xff] %v425
        %456 = vst [vmem:[%s214 + $0x60] sm:$0xff] %v430
        %457 = vst [vmem:[%s214 + $0x68] sm:$0xff] %v433
        %458 = vst [vmem:[%s214 + $0x70] sm:$0xff] %v438
        %459 = vst [vmem:[%s214 + $0x78] sm:$0xff] %v441
        %s460 = sand.u32 %s119, 1
        %s461 = scalar_lea.sflag [#allocation3], %s460
        %s462 = sand.u32 %s119, 1
        %s463 = smul.addr %s462, 128
        %s464 = scalar_lea.vmem [#allocation2], %s463
        // Predicated region
        $region33: #{tpu_custom_call.1} parent=31 // pred_check
          %p465 = pneg %p129
        $region34: #{tpu_custom_call.1} parent=31 // pred_check_branch
          %467 = sbr.rel (%p465) target = $region36
        $region35: #{tpu_custom_call.1} parent=31 // pred_region
          %s468 = smul.u32 16, %s22
          %s470 = ssub.s32 2048, 2048
          %471 = vsyncadd %s461, %s470
          %s472 = smul.addr %s21, 16
          %s473 = sadd.s32 %s468, %s472
          %s474 = smul.addr %s473, 128
          %s475 = scalar_lea.hbm %s3, %s474
          %s476 = sshll.u32 %s464, 4
          %s477 = int_to_ptr.vmem [resolvable:$true] %s476
          %482 = dma.vmem_to_hbm [thread:$0]  %s477, 2048, %s475, %s461, 128, 128, 8
        $region36: #{tpu_custom_call.1} parent=31 // pred_fallthru
          _
      $region32: #{tpu_custom_call.1} parent=5 // pred_fallthru
        _
      %p483 = scmp.le.s32.totalorder 2, %s12
      // Predicated region
      $region37: #{tpu_custom_call.1} parent=5 // pred_check
        %p484 = pneg %p483
      $region38: #{tpu_custom_call.1} parent=5 // pred_check_branch
        %486 = sbr.rel (%p484) target = $region40
      $region39: #{tpu_custom_call.1} parent=5 // pred_region
        %s487 = ssub.s32 %s12, 2
        // Predicated region
        $region41: #{tpu_custom_call.1} parent=39 // pred_check
          %p488 = pneg %p135
        $region42: #{tpu_custom_call.1} parent=39 // pred_check_branch
          %490 = sbr.rel (%p488) target = $region44
        $region43: #{tpu_custom_call.1} parent=39 // pred_region
          %s491 = sand.u32 %s120, 1
          %s492 = scalar_lea.sflag [#allocation3], %s491
          %s493 = sand.u32 %s120, 1
          %s494 = smul.addr %s493, 128
          %s495 = scalar_lea.vmem [#allocation2], %s494
          %496 = dma.done %s492, 2048
        $region44: #{tpu_custom_call.1} parent=39 // pred_fallthru
          _
      $region40: #{tpu_custom_call.1} parent=5 // pred_fallthru
        _
    $region6: #{tpu_custom_call.1} parent=1 // loop_footer
      %s16 = sadd.s32 1, %s12
    $region7: #{tpu_custom_call.1} parent=1 // loop_footer_branch
      %11 = sbr.rel target = $region3
    $region8: #{tpu_custom_call.1} parent=1 // loop_exit
      _
    %497 = vsyncpa [#allocation3], 1
    %s498 = scalar_lea.sflag [#allocation3], 1
    %499 = vsyncpa %s498, 1

</llo_original>
